<compile_context>
chip_gen: v5e
topology: v5e:2x2
jax: 0.10.0
libtpu: 0.0.40
codegen_flags: <defaults>
</compile_context>

<pallas_src>
import functools

import jax
import jax.numpy as jnp
from jax import lax
from jax.experimental import pallas as pl
from jax.experimental.pallas import tpu as pltpu


def _round_up(x, m):
    return (x + m - 1) // m * m


def resblock_kernel(x_ref, w1_ref, b1_ref, w3_ref, b3_ref, o_ref, hext_ref,
                    *, W, pad, compute_dtype):
    """One grid step = one image in NC(HW) (lane = H*W) layout.

    x_ref   : (1, C, P)        input image, f32
    w1_ref  : (Cp, C)          1x1 conv weight [co, ci], compute_dtype; rows >= C are 0
    b1_ref  : (Cp, 1)          f32
    w3_ref  : (3, Cout, 3*Cp)  3x3 conv weight grouped by kx; cols (ky, ci), compute_dtype
    b3_ref  : (Cout, 1)        f32
    o_ref   : (1, Cout, P)     output image
    hext_ref: (Cp, P + 2*pad)  persistent VMEM scratch for the halo'd hidden map
    """
    _, C, P = x_ref.shape
    Cp = hext_ref.shape[0]
    Cout = o_ref.shape[1]

    x = x_ref[0]                                         # (C, P) f32

    # --- zero the halo of the persistent scratch (aligned, tiny: 2*pad lanes).
    # Done every step (not pl.when(pid==0)) so megacore sharding of the
    # parallel batch axis on v7x stays correct; the center is overwritten below.
    zhalo = jnp.zeros((Cp, pad), compute_dtype)
    hext_ref[:, :pad] = zhalo
    hext_ref[:, pad + P:] = zhalo

    # --- 1x1 conv (bf16 MXU operands, f32 accumulation) + bias + ReLU in f32.
    h = jnp.dot(w1_ref[...], x.astype(compute_dtype),
                preferred_element_type=jnp.float32) + b1_ref[...]
    h = jnp.maximum(h, 0.0)                              # (Cp, P) f32; padded rows stay 0

    # --- lane-dense, 128-aligned store of the hidden map into the scratch.
    hext_ref[:, pad:pad + P] = h.astype(compute_dtype)

    # --- pixel-column masks for row-wrap along the flattened pixel axis.
    col = lax.broadcasted_iota(jnp.int32, (1, P), 1) % W
    not_left = col != 0                                  # kx=-1 would wrap to prev row
    not_right = col != (W - 1)                           # kx=+1 would wrap to next row

    # --- 3x3 conv: 3 matmuls (one per kx) with K = 3*Cp, slabs sliced straight
    #     from the scratch; masks applied post-matmul to (Cout, P) per-dx parts.
    acc = x + b3_ref[...]                                # residual + bias, f32 (Cout == C)
    for g, dx in enumerate((-1, 0, 1)):
        # slab[(ky)*Cp + c, q] = h_ext[c, pad + (ky-1)*W + dx + q]
        slab = jnp.concatenate(
            [hext_ref[:, pad + dy * W + dx: pad + dy * W + dx + P]
             for dy in (-1, 0, 1)],
            axis=0)                                      # (3*Cp, P) compute_dtype
        part = jnp.dot(w3_ref[g], slab,
                       preferred_element_type=jnp.float32)   # (Cout, P) f32
        if dx == -1:
            part = jnp.where(not_left, part, 0.0)        # kill wrapped columns (f32)
        elif dx == 1:
            part = jnp.where(not_right, part, 0.0)
        acc = acc + part

    # --- lane-dense store.
    o_ref[0] = acc.astype(o_ref.dtype)


@functools.partial(jax.jit, static_argnames=("compute_dtype",))
def resblock_forward(x_nchw, w1, b1, w3, b3, *, compute_dtype=jnp.bfloat16):
    """x_nchw: (N, C, H, W); w1: (C, C, 1, 1); b1: (C,); w3: (Cout, C, 3, 3);
    b3: (Cout,).  Returns (N, Cout, H, W)."""
    N, C, H, W = x_nchw.shape
    Cout = w3.shape[0]
    assert Cout == C, "ResBlock residual add requires nin == nout"
    assert w1.shape == (C, C, 1, 1) and w3.shape == (Cout, C, 3, 3)

    P = H * W
    cdt = jnp.dtype(compute_dtype)
    sub = 8 if cdt == jnp.dtype(jnp.float32) else 16     # sublane tile per dtype packing
    Cp = _round_up(C, sub)                               # aligned K for the 3x3 matmuls
    pad = _round_up(max(W + 1, 128), 128)                # lane-aligned zero halo width

    # --- free layout work in the wrapper (reshape/pad only, no transposes of x) ---
    x_flat = x_nchw.reshape(N, C, P)
    w1_p = jnp.pad(w1.reshape(C, C), ((0, Cp - C), (0, 0))).astype(cdt)    # (Cp, C)
    b1_p = jnp.pad(b1, (0, Cp - C)).reshape(Cp, 1).astype(jnp.float32)     # (Cp, 1)
    w3_g = jnp.pad(jnp.transpose(w3, (3, 0, 2, 1)),                        # (KW,O,KH,I)
                   ((0, 0), (0, 0), (0, 0), (0, Cp - C)))
    w3_g = w3_g.reshape(3, Cout, 3 * Cp).astype(cdt)                       # [kx, co, ky*Cp+ci]
    b3_c = b3.reshape(Cout, 1).astype(jnp.float32)

    kernel = functools.partial(resblock_kernel, W=W, pad=pad, compute_dtype=cdt)

    out_itemsize = jnp.dtype(x_nchw.dtype).itemsize
    flops = 2 * N * P * (Cp * C + 9 * Cout * Cp) + 6 * N * Cout * P
    bytes_accessed = ((N * C * P + N * Cout * P) * out_itemsize
                      + (w1_p.size + w3_g.size) * cdt.itemsize
                      + (b1_p.size + b3_c.size) * 4)

    out_flat = pl.pallas_call(
        kernel,
        out_shape=jax.ShapeDtypeStruct((N, Cout, P), x_nchw.dtype),
        grid_spec=pltpu.PrefetchScalarGridSpec(
            num_scalar_prefetch=0,
            grid=(N,),                                   # batch stays on the grid
            in_specs=[
                pl.BlockSpec((1, C, P), lambda n: (n, 0, 0)),
                pl.BlockSpec((Cp, C), lambda n: (0, 0)),
                pl.BlockSpec((Cp, 1), lambda n: (0, 0)),
                pl.BlockSpec((3, Cout, 3 * Cp), lambda n: (0, 0, 0)),
                pl.BlockSpec((Cout, 1), lambda n: (0, 0)),
            ],
            out_specs=pl.BlockSpec((1, Cout, P), lambda n: (n, 0, 0)),
            scratch_shapes=[pltpu.VMEM((Cp, P + 2 * pad), cdt)],
        ),
        compiler_params=pltpu.CompilerParams(
            dimension_semantics=("parallel",),
            vmem_limit_bytes=64 * 1024 * 1024),
        cost_estimate=pl.CostEstimate(flops=flops, transcendentals=0,
                                      bytes_accessed=bytes_accessed),
    )(x_flat, w1_p, b1_p, w3_g, b3_c)

    return out_flat.reshape(N, Cout, H, W)


def resblock_reference(x_nchw, w1, b1, w3, b3):
    """Pure-JAX reference matching PyTorch nn.Conv2d semantics (NCHW)."""
    dn = lax.conv_dimension_numbers(x_nchw.shape, w1.shape, ("NCHW", "OIHW", "NCHW"))
    h = lax.conv_general_dilated(x_nchw, w1, (1, 1), "VALID", dimension_numbers=dn)
    h = jnp.maximum(h + b1.reshape(1, -1, 1, 1), 0.0)
    y = lax.conv_general_dilated(h, w3, (1, 1), ((1, 1), (1, 1)), dimension_numbers=dn)
    return y + b3.reshape(1, -1, 1, 1) + x_nchw


if __name__ == "__main__":
    N, nin, nout, H, W = 2, 4, 4, 16, 16

    key = jax.random.PRNGKey(0)
    kx, k1, kb1, k3, kb3 = jax.random.split(key, 5)
    x = jax.random.normal(kx, (N, nin, H, W), dtype=jnp.float32)
    w1 = 0.1 * jax.random.normal(k1, (nin, nin, 1, 1), dtype=jnp.float32)
    b1 = 0.1 * jax.random.normal(kb1, (nin,), dtype=jnp.float32)
    w3 = 0.1 * jax.random.normal(k3, (nout, nin, 3, 3), dtype=jnp.float32)
    b3 = 0.1 * jax.random.normal(kb3, (nout,), dtype=jnp.float32)

    ref = resblock_reference(x, w1, b1, w3, b3)

    # Exact-math path (f32 MXU operands): tight tolerance vs. XLA reference.
    out_f32 = jax.block_until_ready(
        resblock_forward(x, w1, b1, w3, b3, compute_dtype=jnp.float32))
    assert out_f32.shape == ref.shape
    assert jnp.allclose(out_f32, ref, atol=2e-4, rtol=2e-4), "mismatch (f32 path)"

    # Default bf16-MXU-operand path: looser tolerance for the bf16 cast.
    out_bf16 = jax.block_until_ready(resblock_forward(x, w1, b1, w3, b3))
    assert out_bf16.shape == ref.shape
    assert jnp.allclose(out_bf16, ref, atol=3e-2, rtol=3e-2), "mismatch (bf16 path)"

    print("KERNEL_OK")
</pallas_src>

<mosaic_0001>
module attributes {stable_mosaic.version = 11 : i64} {
  func.func @resblock_kernel(%arg0: i32, %arg1: memref<1x4x256xf32, #tpu.memory_space<vmem>>, %arg2: memref<8x4xf32, #tpu.memory_space<vmem>>, %arg3: memref<8x1xf32, #tpu.memory_space<vmem>>, %arg4: memref<3x4x24xf32, #tpu.memory_space<vmem>>, %arg5: memref<4x1xf32, #tpu.memory_space<vmem>>, %arg6: memref<1x4x256xf32, #tpu.memory_space<vmem>>, %arg7: memref<8x512xf32, #tpu.memory_space<vmem>>) attributes {dimension_semantics = [#tpu.dimension_semantics<parallel>], iteration_bounds = array<i64: 2>, scalar_prefetch = 0 : i64, scratch_operands = 1 : i64, tpu.core_type = #tpu.core_type<tc>, window_params = [{transform_indices = @transform_0, window_bounds = array<i64: 1, 4, 256>}, {pipeline_mode = #tpu.pipeline_mode<synchronous>, transform_indices = @transform_1, window_bounds = array<i64: 8, 4>}, {pipeline_mode = #tpu.pipeline_mode<synchronous>, transform_indices = @transform_2, window_bounds = array<i64: 8, 1>}, {pipeline_mode = #tpu.pipeline_mode<synchronous>, transform_indices = @transform_3, window_bounds = array<i64: 3, 4, 24>}, {pipeline_mode = #tpu.pipeline_mode<synchronous>, transform_indices = @transform_4, window_bounds = array<i64: 4, 1>}, {transform_indices = @transform_5, window_bounds = array<i64: 1, 4, 256>}]} {
    %c0 = arith.constant 0 : index
    %c0_0 = arith.constant 0 : index
    %c0_1 = arith.constant 0 : index
    %0 = vector.load %arg1[%c0, %c0_0, %c0_1] : memref<1x4x256xf32, #tpu.memory_space<vmem>>, vector<1x4x256xf32>
    %1 = vector.shape_cast %0 : vector<1x4x256xf32> to vector<4x256xf32>
    %cst = arith.constant 0.000000e+00 : f32
    %2 = vector.broadcast %cst : f32 to vector<8x128xf32>
    %c0_2 = arith.constant 0 : index
    %c0_3 = arith.constant 0 : index
    %3 = vector.load %arg7[%c0_2, %c0_3] : memref<8x512xf32, #tpu.memory_space<vmem>>, vector<8x128xf32>
    tpu.vector_store %arg7[%c0_2, %c0_3], %2 {strides = array<i32>} : memref<8x512xf32, #tpu.memory_space<vmem>>, vector<8x128xf32>,
    %c0_4 = arith.constant 0 : index
    %c384 = arith.constant 384 : index
    %4 = vector.load %arg7[%c0_4, %c384] : memref<8x512xf32, #tpu.memory_space<vmem>>, vector<8x128xf32>
    tpu.vector_store %arg7[%c0_4, %c384], %2 {strides = array<i32>} : memref<8x512xf32, #tpu.memory_space<vmem>>, vector<8x128xf32>,
    %c0_5 = arith.constant 0 : index
    %c0_6 = arith.constant 0 : index
    %5 = vector.load %arg2[%c0_5, %c0_6] : memref<8x4xf32, #tpu.memory_space<vmem>>, vector<8x4xf32>
    %cst_7 = arith.constant dense<0.000000e+00> : vector<8x256xf32>
    %6 = tpu.matmul %5, %1, %cst_7 {dimension_numbers = #tpu.dot_dimension_numbers<[1], [0], [0], [1], [0, 0, 1, 1], [], []>} : vector<8x4xf32>, vector<4x256xf32>, vector<8x256xf32> -> vector<8x256xf32>
    %c0_8 = arith.constant 0 : index
    %c0_9 = arith.constant 0 : index
    %7 = vector.load %arg3[%c0_8, %c0_9] : memref<8x1xf32, #tpu.memory_space<vmem>>, vector<8x1xf32>
    %8 = vector.broadcast %7 : vector<8x1xf32> to vector<8x256xf32>
    %9 = arith.addf %6, %8 : vector<8x256xf32>
    %cst_10 = arith.constant 0.000000e+00 : f32
    %10 = vector.broadcast %cst_10 : f32 to vector<8x256xf32>
    %11 = arith.maximumf %9, %10 : vector<8x256xf32>
    %c0_11 = arith.constant 0 : index
    %c128 = arith.constant 128 : index
    %12 = vector.load %arg7[%c0_11, %c128] : memref<8x512xf32, #tpu.memory_space<vmem>>, vector<8x256xf32>
    tpu.vector_store %arg7[%c0_11, %c128], %11 {strides = array<i32>} : memref<8x512xf32, #tpu.memory_space<vmem>>, vector<8x256xf32>,
    %13 = tpu.iota {dimensions = array<i32: 1>} : vector<1x256xi32>
    %c16_i32 = arith.constant 16 : i32
    %c0_i32 = arith.constant 0 : i32
    %14 = arith.cmpi eq, %c16_i32, %c0_i32 : i32
    %c1_i32 = arith.constant 1 : i32
    %15 = arith.select %14, %c1_i32, %c16_i32 : i32
    %16 = vector.broadcast %15 : i32 to vector<1x256xi32>
    %17 = arith.remsi %13, %16 : vector<1x256xi32>
    %c0_i32_12 = arith.constant 0 : i32
    %18 = vector.broadcast %c0_i32_12 : i32 to vector<1x256xi32>
    %19 = arith.cmpi ne, %17, %18 : vector<1x256xi32>
    %c0_i32_13 = arith.constant 0 : i32
    %20 = vector.broadcast %c0_i32_13 : i32 to vector<1x256xi32>
    %21 = arith.cmpi slt, %17, %20 : vector<1x256xi32>
    %c0_i32_14 = arith.constant 0 : i32
    %22 = arith.cmpi slt, %15, %c0_i32_14 : i32
    %23 = vector.broadcast %22 : i1 to vector<1x256xi1>
    %24 = vector.broadcast %23 : vector<1x256xi1> to vector<1x256xi1>
    %25 = arith.xori %21, %24 : vector<1x256xi1>
    %26 = arith.andi %25, %19 : vector<1x256xi1>
    %27 = vector.broadcast %15 : i32 to vector<1x256xi32>
    %28 = arith.addi %17, %27 : vector<1x256xi32>
    %29 = arith.select %26, %28, %17 : vector<1x256xi1>, vector<1x256xi32>
    %c0_i32_15 = arith.constant 0 : i32
    %30 = vector.broadcast %c0_i32_15 : i32 to vector<1x256xi32>
    %31 = arith.cmpi ne, %29, %30 : vector<1x256xi32>
    %c15_i32 = arith.constant 15 : i32
    %32 = vector.broadcast %c15_i32 : i32 to vector<1x256xi32>
    %33 = arith.cmpi ne, %29, %32 : vector<1x256xi32>
    %c0_16 = arith.constant 0 : index
    %c0_17 = arith.constant 0 : index
    %34 = vector.load %arg5[%c0_16, %c0_17] : memref<4x1xf32, #tpu.memory_space<vmem>>, vector<4x1xf32>
    %35 = vector.broadcast %34 : vector<4x1xf32> to vector<4x256xf32>
    %36 = arith.addf %1, %35 : vector<4x256xf32>
    %c0_18 = arith.constant 0 : index
    %c111 = arith.constant 111 : index
    %37 = vector.load %arg7[%c0_18, %c111] : memref<8x512xf32, #tpu.memory_space<vmem>>, vector<8x256xf32>
    %c0_19 = arith.constant 0 : index
    %c127 = arith.constant 127 : index
    %38 = vector.load %arg7[%c0_19, %c127] : memref<8x512xf32, #tpu.memory_space<vmem>>, vector<8x256xf32>
    %c0_20 = arith.constant 0 : index
    %c143 = arith.constant 143 : index
    %39 = vector.load %arg7[%c0_20, %c143] : memref<8x512xf32, #tpu.memory_space<vmem>>, vector<8x256xf32>
    %40 = tpu.concatenate %37, %38, %39 in 0 : vector<8x256xf32>, vector<8x256xf32>, vector<8x256xf32> -> vector<24x256xf32>
    %c0_21 = arith.constant 0 : index
    %c0_22 = arith.constant 0 : index
    %c0_23 = arith.constant 0 : index
    %41 = vector.load %arg4[%c0_21, %c0_22, %c0_23] : memref<3x4x24xf32, #tpu.memory_space<vmem>>, vector<1x4x24xf32>
    %42 = vector.shape_cast %41 : vector<1x4x24xf32> to vector<4x24xf32>
    %cst_24 = arith.constant dense<0.000000e+00> : vector<4x256xf32>
    %43 = tpu.matmul %42, %40, %cst_24 {dimension_numbers = #tpu.dot_dimension_numbers<[1], [0], [0], [1], [0, 0, 1, 1], [], []>} : vector<4x24xf32>, vector<24x256xf32>, vector<4x256xf32> -> vector<4x256xf32>
    %cst_25 = arith.constant 0.000000e+00 : f32
    %44 = vector.shape_cast %31 : vector<1x256xi1> to vector<1x256xi1>
    %45 = vector.broadcast %44 : vector<1x256xi1> to vector<4x256xi1>
    %46 = vector.broadcast %cst_25 : f32 to vector<4x256xf32>
    %47 = arith.select %45, %43, %46 : vector<4x256xi1>, vector<4x256xf32>
    %48 = arith.addf %36, %47 : vector<4x256xf32>
    %c0_26 = arith.constant 0 : index
    %c112 = arith.constant 112 : index
    %49 = vector.load %arg7[%c0_26, %c112] : memref<8x512xf32, #tpu.memory_space<vmem>>, vector<8x256xf32>
    %c0_27 = arith.constant 0 : index
    %c128_28 = arith.constant 128 : index
    %50 = vector.load %arg7[%c0_27, %c128_28] : memref<8x512xf32, #tpu.memory_space<vmem>>, vector<8x256xf32>
    %c0_29 = arith.constant 0 : index
    %c144 = arith.constant 144 : index
    %51 = vector.load %arg7[%c0_29, %c144] : memref<8x512xf32, #tpu.memory_space<vmem>>, vector<8x256xf32>
    %52 = tpu.concatenate %49, %50, %51 in 0 : vector<8x256xf32>, vector<8x256xf32>, vector<8x256xf32> -> vector<24x256xf32>
    %c1 = arith.constant 1 : index
    %c0_30 = arith.constant 0 : index
    %c0_31 = arith.constant 0 : index
    %53 = vector.load %arg4[%c1, %c0_30, %c0_31] : memref<3x4x24xf32, #tpu.memory_space<vmem>>, vector<1x4x24xf32>
    %54 = vector.shape_cast %53 : vector<1x4x24xf32> to vector<4x24xf32>
    %cst_32 = arith.constant dense<0.000000e+00> : vector<4x256xf32>
    %55 = tpu.matmul %54, %52, %cst_32 {dimension_numbers = #tpu.dot_dimension_numbers<[1], [0], [0], [1], [0, 0, 1, 1], [], []>} : vector<4x24xf32>, vector<24x256xf32>, vector<4x256xf32> -> vector<4x256xf32>
    %56 = arith.addf %48, %55 : vector<4x256xf32>
    %c0_33 = arith.constant 0 : index
    %c113 = arith.constant 113 : index
    %57 = vector.load %arg7[%c0_33, %c113] : memref<8x512xf32, #tpu.memory_space<vmem>>, vector<8x256xf32>
    %c0_34 = arith.constant 0 : index
    %c129 = arith.constant 129 : index
    %58 = vector.load %arg7[%c0_34, %c129] : memref<8x512xf32, #tpu.memory_space<vmem>>, vector<8x256xf32>
    %c0_35 = arith.constant 0 : index
    %c145 = arith.constant 145 : index
    %59 = vector.load %arg7[%c0_35, %c145] : memref<8x512xf32, #tpu.memory_space<vmem>>, vector<8x256xf32>
    %60 = tpu.concatenate %57, %58, %59 in 0 : vector<8x256xf32>, vector<8x256xf32>, vector<8x256xf32> -> vector<24x256xf32>
    %c2 = arith.constant 2 : index
    %c0_36 = arith.constant 0 : index
    %c0_37 = arith.constant 0 : index
    %61 = vector.load %arg4[%c2, %c0_36, %c0_37] : memref<3x4x24xf32, #tpu.memory_space<vmem>>, vector<1x4x24xf32>
    %62 = vector.shape_cast %61 : vector<1x4x24xf32> to vector<4x24xf32>
    %cst_38 = arith.constant dense<0.000000e+00> : vector<4x256xf32>
    %63 = tpu.matmul %62, %60, %cst_38 {dimension_numbers = #tpu.dot_dimension_numbers<[1], [0], [0], [1], [0, 0, 1, 1], [], []>} : vector<4x24xf32>, vector<24x256xf32>, vector<4x256xf32> -> vector<4x256xf32>
    %cst_39 = arith.constant 0.000000e+00 : f32
    %64 = vector.shape_cast %33 : vector<1x256xi1> to vector<1x256xi1>
    %65 = vector.broadcast %64 : vector<1x256xi1> to vector<4x256xi1>
    %66 = vector.broadcast %cst_39 : f32 to vector<4x256xf32>
    %67 = arith.select %65, %63, %66 : vector<4x256xi1>, vector<4x256xf32>
    %68 = arith.addf %56, %67 : vector<4x256xf32>
    %c0_40 = arith.constant 0 : index
    %c0_41 = arith.constant 0 : index
    %c0_42 = arith.constant 0 : index
    %69 = vector.load %arg6[%c0_40, %c0_41, %c0_42] : memref<1x4x256xf32, #tpu.memory_space<vmem>>, vector<1x4x256xf32>
    %70 = vector.shape_cast %69 : vector<1x4x256xf32> to vector<4x256xf32>
    %71 = vector.shape_cast %68 : vector<4x256xf32> to vector<1x4x256xf32>
    tpu.vector_store %arg6[%c0_40, %c0_41, %c0_42], %71 {strides = array<i32>} : memref<1x4x256xf32, #tpu.memory_space<vmem>>, vector<1x4x256xf32>,
    return
  }
  func.func @transform_0(%arg0: i32) -> (i32, i32, i32) {
    %c0_i32 = arith.constant 0 : i32
    %c0_i32_0 = arith.constant 0 : i32
    %c0_i32_1 = arith.constant 0 : i32
    return %arg0, %c0_i32, %c0_i32_0 : i32, i32, i32
  }
  func.func @transform_1(%arg0: i32) -> (i32, i32) {
    %c0_i32 = arith.constant 0 : i32
    %c0_i32_0 = arith.constant 0 : i32
    %c0_i32_1 = arith.constant 0 : i32
    return %c0_i32, %c0_i32_0 : i32, i32
  }
  func.func @transform_2(%arg0: i32) -> (i32, i32) {
    %c0_i32 = arith.constant 0 : i32
    %c0_i32_0 = arith.constant 0 : i32
    %c0_i32_1 = arith.constant 0 : i32
    return %c0_i32, %c0_i32_0 : i32, i32
  }
  func.func @transform_3(%arg0: i32) -> (i32, i32, i32) {
    %c0_i32 = arith.constant 0 : i32
    %c0_i32_0 = arith.constant 0 : i32
    %c0_i32_1 = arith.constant 0 : i32
    %c0_i32_2 = arith.constant 0 : i32
    return %c0_i32, %c0_i32_0, %c0_i32_1 : i32, i32, i32
  }
  func.func @transform_4(%arg0: i32) -> (i32, i32) {
    %c0_i32 = arith.constant 0 : i32
    %c0_i32_0 = arith.constant 0 : i32
    %c0_i32_1 = arith.constant 0 : i32
    return %c0_i32, %c0_i32_0 : i32, i32
  }
  func.func @transform_5(%arg0: i32) -> (i32, i32, i32) {
    %c0_i32 = arith.constant 0 : i32
    %c0_i32_0 = arith.constant 0 : i32
    %c0_i32_1 = arith.constant 0 : i32
    return %arg0, %c0_i32, %c0_i32_0 : i32, i32, i32
  }
}

</mosaic_0001>

<llo_original>
// kernel: resblock_forward.1
$region0: #{resblock_forward.1}
  #allocation0 [shape = 'u32[]', space=smem, size = 0x4, offset = 0x4, fixed_abs, tag = 'smem constant byte address 0x4 - core index']
  #allocation1 [shape = 'u32[72,128]{1,0:T(1,128)}', space=vmem, size = 0x9000, scoped, tag = 'internal scratch']
  #allocation2 [shape = 'f32[8,512]{1,0:T(8,128)}', space=vmem, size = 0x4000, scoped, tag = 'scratch operand']
  %s0 = inlined_call_operand.vmem [shape: f32[2,4,256], index: 0, kind: input, shape index: {}]
  %s1 = inlined_call_operand.vmem [shape: f32[8,4], index: 1, kind: input, shape index: {}]
  %s2 = inlined_call_operand.vmem [shape: f32[8,1], index: 2, kind: input, shape index: {}]
  %s3 = inlined_call_operand.vmem [shape: f32[3,4,24], index: 3, kind: input, shape index: {}]
  %s4 = inlined_call_operand.vmem [shape: f32[4,1], index: 4, kind: input, shape index: {}]
  %s5 = inlined_call_operand.vmem [shape: f32[2,4,256], index: 5, kind: output, shape index: {}]
  %s6 = sld [smem:[#allocation0]]
  $region53: #{resblock_forward.1} parent=0
    _
  %s8 = ssub.s32 1, %s6
  %s9 = scalar_select 0, %s8, %s6
  loop: start=0, step=1, limit=4
  $region2: #{resblock_forward.1} parent=0 // loop_pre_header
    _
  $region3: #{resblock_forward.1} parent=0 // loop_header
    %s11 = sphi 0, %s15
    %p12 = scmp.ge.s32.totalorder %s11, 4
    %s21 = sphi 0, %s23
    %s24 = sphi 0, %s21
    %s25 = sphi 0, %s24
    %s41 = sphi 0, %s25
    %s45 = sphi 0, %s45
    %s47 = sphi 0, %s45
    %s48 = sphi 0, %s47
    %s62 = sphi 0, %s48
    %s66 = sphi 0, %s66
    %s68 = sphi 0, %s66
    %s69 = sphi 0, %s68
    %s83 = sphi 0, %s69
    %s87 = sphi 0, %s87
    %s89 = sphi 0, %s87
    %s90 = sphi 0, %s89
    %s104 = sphi 0, %s90
    %s108 = sphi 0, %s108
    %s110 = sphi 0, %s108
    %s111 = sphi 0, %s110
    %s125 = sphi 0, %s111
    %s131 = sphi 0, %s133
    %s134 = sphi 0, %s131
    %s135 = sphi 0, %s134
    %s151 = sphi 0, %s135
  $region4: #{resblock_forward.1} parent=0 // loop_header_branch
    %14 = sbr.rel (%p12) target = $region8
  $region5: #{resblock_forward.1} parent=0 // loop_body
    %s16 = ssub.s32 %s11, 1
    %s17 = ssub.s32 %s11, 2
    %s18 = sadd.s32 %s11, 1
    %s19 = ssub.s32 %s11, %s18
    %p20 = scmp.eq.s32.totalorder %s19, 0
    %s22 = sadd.s32 %s21, 1
    %s23 = scalar_select %p20, %s21, %s22
    %p26 = pneg %p20
    %p27 = scmp.eq.s32.totalorder %s11, 1
    %p28 = por %p26, %p27
    %p29 = scmp.ne.s32.totalorder %s21, %s24
    %p30 = scmp.eq.s32.totalorder %s11, 0
    %p31 = por %p29, %p30
    %p32 = scmp.ne.s32.totalorder %s21, %s24
    %p33 = scmp.eq.s32.totalorder %s16, 1
    %p34 = por %p32, %p33
    %p35 = scmp.ne.s32.totalorder %s24, %s25
    %p36 = scmp.eq.s32.totalorder %s16, 0
    %p37 = por %p35, %p36
    %p38 = scmp.ne.s32.totalorder %s24, %s25
    %p39 = scmp.eq.s32.totalorder %s17, 1
    %p40 = por %p38, %p39
    %p42 = scmp.ne.s32.totalorder %s25, %s41
    %p43 = scmp.eq.s32.totalorder %s17, 0
    %p44 = por %p42, %p43
    %s46 = sadd.s32 %s45, 1
    %p49 = scmp.eq.s32.totalorder %s11, 1
    %p50 = scmp.ne.s32.totalorder %s45, %s47
    %p51 = scmp.eq.s32.totalorder %s11, 0
    %p52 = por %p50, %p51
    %p53 = scmp.ne.s32.totalorder %s45, %s47
    %p54 = scmp.eq.s32.totalorder %s16, 1
    %p55 = por %p53, %p54
    %p56 = scmp.ne.s32.totalorder %s47, %s48
    %p57 = scmp.eq.s32.totalorder %s16, 0
    %p58 = por %p56, %p57
    %p59 = scmp.ne.s32.totalorder %s47, %s48
    %p60 = scmp.eq.s32.totalorder %s17, 1
    %p61 = por %p59, %p60
    %p63 = scmp.ne.s32.totalorder %s48, %s62
    %p64 = scmp.eq.s32.totalorder %s17, 0
    %p65 = por %p63, %p64
    %s67 = sadd.s32 %s66, 1
    %p70 = scmp.eq.s32.totalorder %s11, 1
    %p71 = scmp.ne.s32.totalorder %s66, %s68
    %p72 = scmp.eq.s32.totalorder %s11, 0
    %p73 = por %p71, %p72
    %p74 = scmp.ne.s32.totalorder %s66, %s68
    %p75 = scmp.eq.s32.totalorder %s16, 1
    %p76 = por %p74, %p75
    %p77 = scmp.ne.s32.totalorder %s68, %s69
    %p78 = scmp.eq.s32.totalorder %s16, 0
    %p79 = por %p77, %p78
    %p80 = scmp.ne.s32.totalorder %s68, %s69
    %p81 = scmp.eq.s32.totalorder %s17, 1
    %p82 = por %p80, %p81
    %p84 = scmp.ne.s32.totalorder %s69, %s83
    %p85 = scmp.eq.s32.totalorder %s17, 0
    %p86 = por %p84, %p85
    %s88 = sadd.s32 %s87, 1
    %p91 = scmp.eq.s32.totalorder %s11, 1
    %p92 = scmp.ne.s32.totalorder %s87, %s89
    %p93 = scmp.eq.s32.totalorder %s11, 0
    %p94 = por %p92, %p93
    %p95 = scmp.ne.s32.totalorder %s87, %s89
    %p96 = scmp.eq.s32.totalorder %s16, 1
    %p97 = por %p95, %p96
    %p98 = scmp.ne.s32.totalorder %s89, %s90
    %p99 = scmp.eq.s32.totalorder %s16, 0
    %p100 = por %p98, %p99
    %p101 = scmp.ne.s32.totalorder %s89, %s90
    %p102 = scmp.eq.s32.totalorder %s17, 1
    %p103 = por %p101, %p102
    %p105 = scmp.ne.s32.totalorder %s90, %s104
    %p106 = scmp.eq.s32.totalorder %s17, 0
    %p107 = por %p105, %p106
    %s109 = sadd.s32 %s108, 1
    %p112 = scmp.eq.s32.totalorder %s11, 1
    %p113 = scmp.ne.s32.totalorder %s108, %s110
    %p114 = scmp.eq.s32.totalorder %s11, 0
    %p115 = por %p113, %p114
    %p116 = scmp.ne.s32.totalorder %s108, %s110
    %p117 = scmp.eq.s32.totalorder %s16, 1
    %p118 = por %p116, %p117
    %p119 = scmp.ne.s32.totalorder %s110, %s111
    %p120 = scmp.eq.s32.totalorder %s16, 0
    %p121 = por %p119, %p120
    %p122 = scmp.ne.s32.totalorder %s110, %s111
    %p123 = scmp.eq.s32.totalorder %s17, 1
    %p124 = por %p122, %p123
    %p126 = scmp.ne.s32.totalorder %s111, %s125
    %p127 = scmp.eq.s32.totalorder %s17, 0
    %p128 = por %p126, %p127
    %s129 = ssub.s32 %s11, %s18
    %p130 = scmp.eq.s32.totalorder %s129, 0
    %s132 = sadd.s32 %s131, 1
    %s133 = scalar_select %p130, %s131, %s132
    %p136 = pneg %p130
    %p137 = scmp.eq.s32.totalorder %s11, 1
    %p138 = por %p136, %p137
    %p139 = scmp.ne.s32.totalorder %s131, %s134
    %p140 = scmp.eq.s32.totalorder %s11, 0
    %p141 = por %p139, %p140
    %p142 = scmp.ne.s32.totalorder %s131, %s134
    %p143 = scmp.eq.s32.totalorder %s16, 1
    %p144 = por %p142, %p143
    %p145 = scmp.ne.s32.totalorder %s134, %s135
    %p146 = scmp.eq.s32.totalorder %s16, 0
    %p147 = por %p145, %p146
    %p148 = scmp.ne.s32.totalorder %s134, %s135
    %p149 = scmp.eq.s32.totalorder %s17, 1
    %p150 = por %p148, %p149
    %p152 = scmp.ne.s32.totalorder %s135, %s151
    %p153 = scmp.eq.s32.totalorder %s17, 0
    %p154 = por %p152, %p153
    %p155 = scmp.le.s32.totalorder 1, %s11
    %p156 = scmp.lt.s32.totalorder %s11, 3
    %p157 = pnand %p155, %p156
    %p158 = pneg %p157
    // Predicated region
    $region9: #{resblock_forward.1} parent=5 // pred_check
      _
    $region10: #{resblock_forward.1} parent=5 // pred_check_branch
      %160 = sbr.rel (%p157) target = $region12
    $region11: #{resblock_forward.1} parent=5 // pred_region
      %s161 = ssub.s32 %s11, 1
      // Predicated region
      $region13: #{resblock_forward.1} parent=11 // pred_check
        %p162 = pneg %p58
      $region14: #{resblock_forward.1} parent=11 // pred_check_branch
        %164 = sbr.rel (%p162) target = $region16
      $region15: #{resblock_forward.1} parent=11 // pred_region
        _
      $region16: #{resblock_forward.1} parent=11 // pred_fallthru
        _
      // Predicated region
      $region17: #{resblock_forward.1} parent=11 // pred_check
        %p165 = pneg %p79
      $region18: #{resblock_forward.1} parent=11 // pred_check_branch
        %167 = sbr.rel (%p165) target = $region20
      $region19: #{resblock_forward.1} parent=11 // pred_region
        _
      $region20: #{resblock_forward.1} parent=11 // pred_fallthru
        _
      // Predicated region
      $region21: #{resblock_forward.1} parent=11 // pred_check
        %p168 = pneg %p100
      $region22: #{resblock_forward.1} parent=11 // pred_check_branch
        %170 = sbr.rel (%p168) target = $region24
      $region23: #{resblock_forward.1} parent=11 // pred_region
        _
      $region24: #{resblock_forward.1} parent=11 // pred_fallthru
        _
      // Predicated region
      $region25: #{resblock_forward.1} parent=11 // pred_check
        %p171 = pneg %p121
      $region26: #{resblock_forward.1} parent=11 // pred_check_branch
        %173 = sbr.rel (%p171) target = $region28
      $region27: #{resblock_forward.1} parent=11 // pred_region
        _
      $region28: #{resblock_forward.1} parent=11 // pred_fallthru
        _
    $region12: #{resblock_forward.1} parent=5 // pred_fallthru
      _
    %p174 = scmp.lt.s32.totalorder %s11, 2
    // Predicated region
    $region29: #{resblock_forward.1} parent=5 // pred_check
      %p175 = pneg %p174
    $region30: #{resblock_forward.1} parent=5 // pred_check_branch
      %177 = sbr.rel (%p175) target = $region32
    $region31: #{resblock_forward.1} parent=5 // pred_region
      // Predicated region
      $region33: #{resblock_forward.1} parent=31 // pred_check
        %p178 = pneg %p31
      $region34: #{resblock_forward.1} parent=31 // pred_check_branch
        %180 = sbr.rel (%p178) target = $region36
      $region35: #{resblock_forward.1} parent=31 // pred_region
        %p181 = scmp.lt.s32.totalorder %s11, 1
        %s182 = scalar_select %p181, %s11, 1
        %s183 = smul.addr %s182, 2
        %s184 = smul.addr %s183, 4
        %s185 = scalar_lea.vmem %s0, %s184
      $region36: #{resblock_forward.1} parent=31 // pred_fallthru
        _
    $region32: #{resblock_forward.1} parent=5 // pred_fallthru
      _
    %p186 = scmp.le.s32.totalorder 1, %s11
    %p187 = scmp.lt.s32.totalorder %s11, 3
    %p188 = pnand %p186, %p187
    %p189 = pneg %p188
    // Predicated region
    $region37: #{resblock_forward.1} parent=5 // pred_check
      _
    $region38: #{resblock_forward.1} parent=5 // pred_check_branch
      %191 = sbr.rel (%p188) target = $region40
    $region39: #{resblock_forward.1} parent=5 // pred_region
      %s192 = ssub.s32 %s11, 1
      %p193 = scmp.lt.s32.totalorder %s16, 1
      %s194 = scalar_select %p193, %s16, 1
      %s195 = smul.addr %s194, 2
      %s196 = smul.addr %s195, 4
      %s197 = scalar_lea.vmem %s0, %s196
      %p198 = pneg %p37
      %p199 = pneg %p34
      %p200 = pneg %p58
      %p201 = pneg %p55
      %p202 = pneg %p79
      %p203 = pneg %p76
      %p204 = pneg %p100
      %p205 = pneg %p97
      %p206 = pneg %p121
      %p207 = pneg %p118
      %p208 = pneg %p147
      %p209 = pneg %p144
      %p210 = scmp.lt.s32.totalorder %s16, 1
      %s211 = scalar_select %p210, %s16, 1
      %s212 = smul.addr %s211, 2
      %s213 = smul.addr %s212, 4
      %s214 = scalar_lea.vmem %s5, %s213
      %p215 = scmp.lt.s32.totalorder %s16, 1
      %s216 = scalar_select %p215, %s16, 1
      %s217 = smul.addr %s216, 2
      %s218 = smul.addr %s217, 4
      %s219 = scalar_lea.vmem %s0, %s218
      %p220 = scmp.lt.s32.totalorder %s16, 1
      %s221 = scalar_select %p220, %s16, 1
      %s222 = smul.addr %s221, 2
      %s223 = smul.addr %s222, 4
      %s224 = scalar_lea.vmem %s5, %s223
      %v225 = vld [vmem:[%s219] sm:$0xff]
      %226 = vst [vmem:[#allocation2] sm:$0xff] 0.0
      %227 = vst [vmem:[#allocation2 + $0x18] sm:$0xff] 0.0
      %v228 = vld [vmem:[%s1] sm:$0xff]
      %v229 = vld [vmem:[%s2] sm:$0xff]
      %231 = vset.pattern.permute.xlu0 0
      %232 = vperm.xlu0 %231, %v229
      %v233 = vpop.permute.xlu0 %232
      %236 = vst [vmem:[#allocation1] ss:$2 sm:$0xff] %v225
      %v237 = vld.sshfl [vmem:[#allocation1] sm:$0xff pattern:$0x75316420]
      %v238 = vld.sshfl [vmem:[#allocation1 + $0x8] sm:$0xff pattern:$0x75316420]
      %vm239 = vcmask 31744
      %v241 = vsel %vm239, %v228, 0
      %vm243 = vcmask 1043456
      %v244 = vsel %vm243, %v237, 0
      %v246 = vsel %vm243, %v238, 0
      %248 = vmatpush.msra.mxu0 0.0
      %249 = vmatpush.msra.mxu0 0.0
      %250 = vmatpush.msra.mxu0 0.0
      %251 = vmatpush.msra.mxu0 0.0
      %252 = vmatpush.msra.mxu0 0.0
      %253 = vmatpush.msra.mxu0 0.0
      %254 = vmatpush.msra.mxu0 0.0
      %255 = vmatpush.msra.mxu0 0.0
      %256 = vmatpush.msra.mxu0 0.0
      %257 = vmatpush.msra.mxu0 0.0
      %258 = vmatpush.msra.mxu0 0.0
      %259 = vmatpush.msra.mxu0 0.0
      %260 = vmatpush.msra.mxu0 0.0
      %261 = vmatpush.msra.mxu0 0.0
      %262 = vmatpush.msra.mxu0 0.0
      %263 = vmatpush.msra.mxu0 %v244
      %264 = vmatmul.f32.gmra.mxu0 %v241
      %v265 = vpop.f32.mrf.mxu0
      %v266 = vadd.f32 %v233, %v265
      %267 = vdwg.mxu0
      %268 = vmatpush.msra.mxu0 0.0
      %269 = vmatpush.msra.mxu0 0.0
      %270 = vmatpush.msra.mxu0 0.0
      %271 = vmatpush.msra.mxu0 0.0
      %272 = vmatpush.msra.mxu0 0.0
      %273 = vmatpush.msra.mxu0 0.0
      %274 = vmatpush.msra.mxu0 0.0
      %275 = vmatpush.msra.mxu0 0.0
      %276 = vmatpush.msra.mxu0 0.0
      %277 = vmatpush.msra.mxu0 0.0
      %278 = vmatpush.msra.mxu0 0.0
      %279 = vmatpush.msra.mxu0 0.0
      %280 = vmatpush.msra.mxu0 0.0
      %281 = vmatpush.msra.mxu0 0.0
      %282 = vmatpush.msra.mxu0 0.0
      %283 = vmatpush.msra.mxu0 %v246
      %284 = vmatmul.f32.gmra.mxu0 %v241
      %v285 = vpop.f32.mrf.mxu0
      %v286 = vadd.f32 %v233, %v285
      %287 = vdwg.mxu0
      %v288 = vmax.f32 %v266, 0.0
      %v289 = vmax.f32 %v286, 0.0
      %290 = vst [vmem:[#allocation2 + $0x8] sm:$0xff] %v288
      %291 = vst [vmem:[#allocation2 + $0x10] sm:$0xff] %v289
      %v292 = vlaneseq
      %v293 = vand.u32 %v292, 127
      %v294 = vadd.s32 %v293, 128
      %vm295 = vcmp.lt.s32.totalorder %v293, 0
      %v296 = vsub.s32 0, %v293
      %v297 = vsel %vm295, %v296, %v293
      %v298 = vshrl.u32 %v297, 4
      %v299 = vand.u32 %v297, 15
      %v300 = vsub.s32 0, %v299
      %v301 = vsel %vm295, %v300, %v299
      %vm302 = vcmp.lt.s32.totalorder %v294, 0
      %v303 = vsub.s32 0, %v294
      %v304 = vsel %vm302, %v303, %v294
      %v305 = vshrl.u32 %v304, 4
      %v306 = vand.u32 %v304, 15
      %v307 = vsub.s32 0, %v306
      %v308 = vsel %vm302, %v307, %v306
      %vm309 = vcmp.ne.s32.totalorder %v301, 0
      %vm310 = vcmp.ne.s32.totalorder %v308, 0
      %vm311 = vcmp.lt.s32.totalorder %v301, 0
      %vm312 = vcmp.lt.s32.totalorder %v308, 0
      %vm313 = vmand %vm311, %vm309
      %vm314 = vmand %vm312, %vm310
      %v315 = vadd.s32 %v301, 16
      %v316 = vadd.s32 %v308, 16
      %v317 = vsel %vm313, %v315, %v301
      %v318 = vsel %vm314, %v316, %v308
      %vm319 = vcmp.ne.s32.totalorder %v317, 0
      %vm320 = vcmp.ne.s32.totalorder %v318, 0
      %vm321 = vcmp.ne.s32.totalorder %v317, 15
      %vm322 = vcmp.ne.s32.totalorder %v318, 15
      %v323 = vld [vmem:[%s4] sm:$0xf]
      %325 = vset.pattern.permute.xlu0 0
      %326 = vperm.xlu0 %325, %v323
      %v327 = vpop.permute.xlu0 %326
      %v329 = vunpack.c.l.s4 839922192
      %v330 = vunpack.c.0.s8 %v329
      %v331 = vperm.slane %v327, %v330
      %v333 = vadd.f32 %v225, %v331
      %v334 = vld [vmem:[#allocation2] sm:$0xff]
      %v335 = vld [vmem:[#allocation2 + $0x8] sm:$0xff]
      %v336 = vld [vmem:[#allocation2 + $0x10] sm:$0xff]
      %v337 = vld [vmem:[#allocation2 + $0x8] sm:$0xff]
      %v338 = vld [vmem:[#allocation2 + $0x10] sm:$0xff]
      %v339 = vld [vmem:[#allocation2 + $0x18] sm:$0xff]
      %343 = vrot.lane.b32.xlu0 %v334, 112
      %v344 = vpop.permute.xlu0 %343
      %345 = vrot.lane.b32.xlu0 %v335, 112
      %v346 = vpop.permute.xlu0 %345
      %347 = vrot.lane.b32.xlu0 %v336, 112
      %v348 = vpop.permute.xlu0 %347
      %vm349 = vcmask 916480
      %v350 = vsel %vm349, %v344, %v346
      %v351 = vsel %vm349, %v346, %v348
      %355 = vrot.lane.b32.xlu0 %v337, 96
      %v356 = vpop.permute.xlu0 %355
      %357 = vrot.lane.b32.xlu0 %v338, 96
      %v358 = vpop.permute.xlu0 %357
      %359 = vrot.lane.b32.xlu0 %v339, 96
      %v360 = vpop.permute.xlu0 %359
      %vm361 = vcmask 785408
      %v362 = vsel %vm361, %v356, %v358
      %v363 = vsel %vm361, %v358, %v360
      %v364 = vld [vmem:[%s3] sm:$0xf]
      %365 = vrot.lane.b32.xlu0 %v334, 17
      %v366 = vpop.permute.xlu0 %365
      %367 = vrot.lane.b32.xlu0 %v335, 17
      %v368 = vpop.permute.xlu0 %367
      %369 = vrot.lane.b32.xlu0 %v336, 17
      %v370 = vpop.permute.xlu0 %369
      %371 = vrot.lane.b32.xlu0 %v350, 17
      %v372 = vpop.permute.xlu0 %371
      %373 = vrot.lane.b32.xlu0 %v351, 17
      %v374 = vpop.permute.xlu0 %373
      %375 = vrot.lane.b32.xlu0 %v348, 17
      %v376 = vpop.permute.xlu0 %375
      %377 = vrot.lane.b32.xlu0 %v356, 17
      %v378 = vpop.permute.xlu0 %377
      %379 = vrot.lane.b32.xlu0 %v362, 17
      %v380 = vpop.permute.xlu0 %379
      %381 = vrot.lane.b32.xlu0 %v363, 17
      %v382 = vpop.permute.xlu0 %381
      %vm383 = vcmask 138240
      %v384 = vsel %vm383, %v366, %v368
      %v385 = vsel %vm383, %v368, %v370
      %v386 = vsel %vm383, %v372, %v374
      %v387 = vsel %vm383, %v374, %v376
      %v388 = vsel %vm383, %v378, %v380
      %v389 = vsel %vm383, %v380, %v382
      %vm396 = vcmask 195584
      %v398 = vsel %vm396, %v364, 0
      %400 = vmatpush.msra.mxu0 0.0
      %401 = vmatpush.msra.mxu0 0.0
      %402 = vmatpush.msra.mxu0 0.0
      %403 = vmatpush.msra.mxu0 0.0
      %404 = vmatpush.msra.mxu0 0.0
      %405 = vmatpush.msra.mxu0 0.0
      %406 = vmatpush.msra.mxu0 0.0
      %407 = vmatpush.msra.mxu0 0.0
      %408 = vmatpush.msra.mxu0 0.0
      %409 = vmatpush.msra.mxu0 0.0
      %410 = vmatpush.msra.mxu0 0.0
      %411 = vmatpush.msra.mxu0 0.0
      %412 = vmatpush.msra.mxu0 0.0
      %413 = vmatpush.msra.mxu0 %v388
      %414 = vmatpush.msra.mxu0 %v386
      %415 = vmatpush.msra.mxu0 %v384
      %416 = vmatmul.f32.gmra.mxu0 %v398
      %v417 = vpop.f32.mrf.mxu0
      %v418 = vadd.f32 0.0, %v417
      %419 = vdwg.mxu0
      %420 = vmatpush.msra.mxu0 0.0
      %421 = vmatpush.msra.mxu0 0.0
      %422 = vmatpush.msra.mxu0 0.0
      %423 = vmatpush.msra.mxu0 0.0
      %424 = vmatpush.msra.mxu0 0.0
      %425 = vmatpush.msra.mxu0 0.0
      %426 = vmatpush.msra.mxu0 0.0
      %427 = vmatpush.msra.mxu0 0.0
      %428 = vmatpush.msra.mxu0 0.0
      %429 = vmatpush.msra.mxu0 0.0
      %430 = vmatpush.msra.mxu0 0.0
      %431 = vmatpush.msra.mxu0 0.0
      %432 = vmatpush.msra.mxu0 0.0
      %433 = vmatpush.msra.mxu0 %v389
      %434 = vmatpush.msra.mxu0 %v387
      %435 = vmatpush.msra.mxu0 %v385
      %436 = vmatmul.f32.gmra.mxu0 %v398
      %v437 = vpop.f32.mrf.mxu0
      %v438 = vadd.f32 0.0, %v437
      %439 = vdwg.mxu0
      %v440 = vsel %vm319, 1, 0
      %v441 = vsel %vm320, 1, 0
      %vm442 = vcmp.eq.s32.totalorder %v440, 1
      %vm443 = vcmp.eq.s32.totalorder %v441, 1
      %v444 = vsel %vm442, %v418, 0.0
      %v445 = vsel %vm443, %v438, 0.0
      %v448 = vrot.slane %v445, 4
      %v449 = vsel %vm243, %v444, %v448
      %v451 = vadd.f32 %v333, %v449
      %s452 = scalar_lea.vmem %s3, 4
      %v453 = vld [vmem:[%s452] sm:$0xf]
      %454 = vrot.lane.b32.xlu0 %v334, 16
      %v455 = vpop.permute.xlu0 %454
      %456 = vrot.lane.b32.xlu0 %v335, 16
      %v457 = vpop.permute.xlu0 %456
      %458 = vrot.lane.b32.xlu0 %v336, 16
      %v459 = vpop.permute.xlu0 %458
      %460 = vrot.lane.b32.xlu0 %v346, 16
      %v461 = vpop.permute.xlu0 %460
      %462 = vrot.lane.b32.xlu0 %v351, 16
      %v463 = vpop.permute.xlu0 %462
      %464 = vrot.lane.b32.xlu0 %v348, 16
      %v465 = vpop.permute.xlu0 %464
      %466 = vrot.lane.b32.xlu0 %v356, 16
      %v467 = vpop.permute.xlu0 %466
      %468 = vrot.lane.b32.xlu0 %v362, 16
      %v469 = vpop.permute.xlu0 %468
      %470 = vrot.lane.b32.xlu0 %v363, 16
      %v471 = vpop.permute.xlu0 %470
      %vm472 = vcmask 130048
      %v473 = vsel %vm472, %v455, %v457
      %v474 = vsel %vm472, %v457, %v459
      %v475 = vsel %vm472, %v461, %v463
      %v476 = vsel %vm472, %v463, %v465
      %v477 = vsel %vm472, %v467, %v469
      %v478 = vsel %vm472, %v469, %v471
      %v486 = vsel %vm396, %v453, 0
      %488 = vmatpush.msra.mxu0 0.0
      %489 = vmatpush.msra.mxu0 0.0
      %490 = vmatpush.msra.mxu0 0.0
      %491 = vmatpush.msra.mxu0 0.0
      %492 = vmatpush.msra.mxu0 0.0
      %493 = vmatpush.msra.mxu0 0.0
      %494 = vmatpush.msra.mxu0 0.0
      %495 = vmatpush.msra.mxu0 0.0
      %496 = vmatpush.msra.mxu0 0.0
      %497 = vmatpush.msra.mxu0 0.0
      %498 = vmatpush.msra.mxu0 0.0
      %499 = vmatpush.msra.mxu0 0.0
      %500 = vmatpush.msra.mxu0 0.0
      %501 = vmatpush.msra.mxu0 %v477
      %502 = vmatpush.msra.mxu0 %v475
      %503 = vmatpush.msra.mxu0 %v473
      %504 = vmatmul.f32.gmra.mxu0 %v486
      %v505 = vpop.f32.mrf.mxu0
      %v506 = vadd.f32 0.0, %v505
      %507 = vdwg.mxu0
      %508 = vmatpush.msra.mxu0 0.0
      %509 = vmatpush.msra.mxu0 0.0
      %510 = vmatpush.msra.mxu0 0.0
      %511 = vmatpush.msra.mxu0 0.0
      %512 = vmatpush.msra.mxu0 0.0
      %513 = vmatpush.msra.mxu0 0.0
      %514 = vmatpush.msra.mxu0 0.0
      %515 = vmatpush.msra.mxu0 0.0
      %516 = vmatpush.msra.mxu0 0.0
      %517 = vmatpush.msra.mxu0 0.0
      %518 = vmatpush.msra.mxu0 0.0
      %519 = vmatpush.msra.mxu0 0.0
      %520 = vmatpush.msra.mxu0 0.0
      %521 = vmatpush.msra.mxu0 %v478
      %522 = vmatpush.msra.mxu0 %v476
      %523 = vmatpush.msra.mxu0 %v474
      %524 = vmatmul.f32.gmra.mxu0 %v486
      %v525 = vpop.f32.mrf.mxu0
      %v526 = vadd.f32 0.0, %v525
      %527 = vdwg.mxu0
      %v530 = vrot.slane %v526, 4
      %v531 = vsel %vm243, %v506, %v530
      %v533 = vadd.f32 %v451, %v531
      %534 = vrot.lane.b32.xlu0 %v337, 112
      %v535 = vpop.permute.xlu0 %534
      %536 = vrot.lane.b32.xlu0 %v338, 112
      %v537 = vpop.permute.xlu0 %536
      %538 = vrot.lane.b32.xlu0 %v339, 112
      %v539 = vpop.permute.xlu0 %538
      %v540 = vsel %vm349, %v535, %v537
      %v541 = vsel %vm349, %v537, %v539
      %s542 = scalar_lea.vmem %s3, 8
      %v543 = vld [vmem:[%s542] sm:$0xf]
      %544 = vrot.lane.b32.xlu0 %v334, 15
      %v545 = vpop.permute.xlu0 %544
      %546 = vrot.lane.b32.xlu0 %v335, 15
      %v547 = vpop.permute.xlu0 %546
      %548 = vrot.lane.b32.xlu0 %v336, 15
      %v549 = vpop.permute.xlu0 %548
      %550 = vrot.lane.b32.xlu0 %v535, 15
      %v551 = vpop.permute.xlu0 %550
      %552 = vrot.lane.b32.xlu0 %v540, 15
      %v553 = vpop.permute.xlu0 %552
      %554 = vrot.lane.b32.xlu0 %v541, 15
      %v555 = vpop.permute.xlu0 %554
      %556 = vrot.lane.b32.xlu0 %v356, 15
      %v557 = vpop.permute.xlu0 %556
      %558 = vrot.lane.b32.xlu0 %v362, 15
      %v559 = vpop.permute.xlu0 %558
      %560 = vrot.lane.b32.xlu0 %v363, 15
      %v561 = vpop.permute.xlu0 %560
      %vm562 = vcmask 121856
      %v563 = vsel %vm562, %v545, %v547
      %v564 = vsel %vm562, %v547, %v549
      %v565 = vsel %vm562, %v551, %v553
      %v566 = vsel %vm562, %v553, %v555
      %v567 = vsel %vm562, %v557, %v559
      %v568 = vsel %vm562, %v559, %v561
      %v576 = vsel %vm396, %v543, 0
      %578 = vmatpush.msra.mxu0 0.0
      %579 = vmatpush.msra.mxu0 0.0
      %580 = vmatpush.msra.mxu0 0.0
      %581 = vmatpush.msra.mxu0 0.0
      %582 = vmatpush.msra.mxu0 0.0
      %583 = vmatpush.msra.mxu0 0.0
      %584 = vmatpush.msra.mxu0 0.0
      %585 = vmatpush.msra.mxu0 0.0
      %586 = vmatpush.msra.mxu0 0.0
      %587 = vmatpush.msra.mxu0 0.0
      %588 = vmatpush.msra.mxu0 0.0
      %589 = vmatpush.msra.mxu0 0.0
      %590 = vmatpush.msra.mxu0 0.0
      %591 = vmatpush.msra.mxu0 %v567
      %592 = vmatpush.msra.mxu0 %v565
      %593 = vmatpush.msra.mxu0 %v563
      %594 = vmatmul.f32.gmra.mxu0 %v576
      %v595 = vpop.f32.mrf.mxu0
      %v596 = vadd.f32 0.0, %v595
      %597 = vdwg.mxu0
      %598 = vmatpush.msra.mxu0 0.0
      %599 = vmatpush.msra.mxu0 0.0
      %600 = vmatpush.msra.mxu0 0.0
      %601 = vmatpush.msra.mxu0 0.0
      %602 = vmatpush.msra.mxu0 0.0
      %603 = vmatpush.msra.mxu0 0.0
      %604 = vmatpush.msra.mxu0 0.0
      %605 = vmatpush.msra.mxu0 0.0
      %606 = vmatpush.msra.mxu0 0.0
      %607 = vmatpush.msra.mxu0 0.0
      %608 = vmatpush.msra.mxu0 0.0
      %609 = vmatpush.msra.mxu0 0.0
      %610 = vmatpush.msra.mxu0 0.0
      %611 = vmatpush.msra.mxu0 %v568
      %612 = vmatpush.msra.mxu0 %v566
      %613 = vmatpush.msra.mxu0 %v564
      %614 = vmatmul.f32.gmra.mxu0 %v576
      %v615 = vpop.f32.mrf.mxu0
      %v616 = vadd.f32 0.0, %v615
      %617 = vdwg.mxu0
      %v618 = vsel %vm321, 1, 0
      %v619 = vsel %vm322, 1, 0
      %vm620 = vcmp.eq.s32.totalorder %v618, 1
      %vm621 = vcmp.eq.s32.totalorder %v619, 1
      %v622 = vsel %vm620, %v596, 0.0
      %v623 = vsel %vm621, %v616, 0.0
      %v626 = vrot.slane %v623, 4
      %v627 = vsel %vm243, %v622, %v626
      %v629 = vadd.f32 %v533, %v627
      %630 = vst [vmem:[%s224] sm:$0xff] %v629
      %p631 = scmp.lt.s32.totalorder %s16, 1
      %s632 = scalar_select %p631, %s16, 1
      %s633 = smul.addr %s632, 2
      %s634 = smul.addr %s633, 4
      %s635 = scalar_lea.vmem %s5, %s634
      // Predicated region
      $region41: #{resblock_forward.1} parent=39 // pred_check
        %p636 = pneg %p144
      $region42: #{resblock_forward.1} parent=39 // pred_check_branch
        %638 = sbr.rel (%p636) target = $region44
      $region43: #{resblock_forward.1} parent=39 // pred_region
        _
      $region44: #{resblock_forward.1} parent=39 // pred_fallthru
        _
    $region40: #{resblock_forward.1} parent=5 // pred_fallthru
      _
    %p639 = scmp.le.s32.totalorder 2, %s11
    // Predicated region
    $region45: #{resblock_forward.1} parent=5 // pred_check
      %p640 = pneg %p639
    $region46: #{resblock_forward.1} parent=5 // pred_check_branch
      %642 = sbr.rel (%p640) target = $region48
    $region47: #{resblock_forward.1} parent=5 // pred_region
      %s643 = ssub.s32 %s11, 2
      // Predicated region
      $region49: #{resblock_forward.1} parent=47 // pred_check
        %p644 = pneg %p150
      $region50: #{resblock_forward.1} parent=47 // pred_check_branch
        %646 = sbr.rel (%p644) target = $region52
      $region51: #{resblock_forward.1} parent=47 // pred_region
        %p647 = scmp.lt.s32.totalorder %s17, 1
        %s648 = scalar_select %p647, %s17, 1
        %s649 = smul.addr %s648, 2
        %s650 = smul.addr %s649, 4
        %s651 = scalar_lea.vmem %s5, %s650
      $region52: #{resblock_forward.1} parent=47 // pred_fallthru
        _
    $region48: #{resblock_forward.1} parent=5 // pred_fallthru
      _
  $region6: #{resblock_forward.1} parent=0 // loop_footer
    %s15 = sadd.s32 1, %s11
  $region7: #{resblock_forward.1} parent=0 // loop_footer_branch
    %10 = sbr.rel target = $region3
  $region8: #{resblock_forward.1} parent=0 // loop_exit
    _

</llo_original>
